<compile_context>
chip_gen: v7x
topology: tpu7x:2x2x1
jax: 0.10.0
libtpu: 0.0.40
codegen_flags: <defaults>
</compile_context>

<pallas_src>
import jax
import jax.numpy as jnp
from jax.experimental import pallas as pl
from jax.experimental.pallas import tpu as pltpu

_LANES = 128        # vreg lane width — last dim of the slab
_SUBLANES = 8       # sublane granularity (f32)
_BLOCK_ROWS = 2048  # 2048 x 128 f32 = 1 MiB per block


# ------------------------------ Pallas kernel --------------------------------

def _fast_sigmoid_kernel(x_ref, o_ref):
    # y = clamp(x + 3, 0, 6) / 6  (hard sigmoid). Pure VPU work in f32.
    x = x_ref[...].astype(jnp.float32)
    y = jnp.minimum(jnp.maximum(x + 3.0, 0.0), 6.0) * (1.0 / 6.0)
    o_ref[...] = y.astype(o_ref.dtype)


# ------------------------------ JAX-side glue ---------------------------------

def fast_sigmoid(x):
    """Elementwise ReLU6(x + 3) / 6 via a single Pallas TPU kernel.

    Works for any shape / float dtype: the tensor is flattened, (only if
    needed) zero-padded to a lane/sublane-aligned (rows, 128) slab, processed
    in large row tiles, then sliced back to the original shape.
    """
    orig_shape = x.shape
    orig_dtype = x.dtype
    total = x.size

    rows = pl.cdiv(total, _LANES)
    if rows <= _BLOCK_ROWS:
        # Single grid step; round rows up to the sublane granularity.
        tile_r = max(_SUBLANES, pl.cdiv(rows, _SUBLANES) * _SUBLANES)
        rows_p = tile_r
    else:
        # Tile the row axis; pad so the tile divides it exactly (no masked
        # edge block -> every store is a full, unmasked vst).
        tile_r = _BLOCK_ROWS
        rows_p = pl.cdiv(rows, tile_r) * tile_r

    padded = rows_p * _LANES
    flat = x.reshape(-1)
    if padded != total:
        flat = jnp.pad(flat, (0, padded - total))
    x2 = flat.reshape(rows_p, _LANES)

    out2 = pl.pallas_call(
        _fast_sigmoid_kernel,
        out_shape=jax.ShapeDtypeStruct((rows_p, _LANES), orig_dtype),
        grid_spec=pltpu.PrefetchScalarGridSpec(
            num_scalar_prefetch=0,
            grid=(rows_p // tile_r,),
            in_specs=[pl.BlockSpec((tile_r, _LANES), lambda i: (i, 0))],
            out_specs=pl.BlockSpec((tile_r, _LANES), lambda i: (i, 0)),
        ),
        compiler_params=pltpu.CompilerParams(
            dimension_semantics=("parallel",),
        ),
    )(x2)

    flat_out = out2.reshape(-1)
    if padded != total:
        flat_out = flat_out[:total]
    return flat_out.reshape(orig_shape)


# ----------------------------------- main --------------------------------------

if __name__ == "__main__":
    key = jax.random.PRNGKey(0)
    # Small shape consistent with the module's elementwise forward: (N, C, H, W).
    x = 4.0 * jax.random.normal(key, (2, 4, 16, 16), jnp.float32)

    fwd = jax.jit(fast_sigmoid)
    out = fwd(x)
    jax.block_until_ready(out)

    # Pure-JAX reference: ReLU6(x + 3) / 6
    ref = jnp.clip(x + 3.0, 0.0, 6.0) / 6.0
    assert out.shape == x.shape, out.shape
    assert out.dtype == x.dtype, out.dtype
    assert jnp.allclose(out, ref, atol=1e-6, rtol=1e-6), float(jnp.max(jnp.abs(out - ref)))

    print("KERNEL_OK")
</pallas_src>

<mosaic_0001>
module attributes {stable_mosaic.version = 11 : i64} {
  func.func @_fast_sigmoid_kernel(%arg0: i32, %arg1: memref<16x128xf32, #tpu.memory_space<vmem>>, %arg2: memref<16x128xf32, #tpu.memory_space<vmem>>) attributes {dimension_semantics = [#tpu.dimension_semantics<parallel>], iteration_bounds = array<i64: 1>, scalar_prefetch = 0 : i64, scratch_operands = 0 : i64, tpu.core_type = #tpu.core_type<tc>, window_params = [{transform_indices = @transform_0, window_bounds = array<i64: 16, 128>}, {transform_indices = @transform_1, window_bounds = array<i64: 16, 128>}]} {
    %c0 = arith.constant 0 : index
    %c0_0 = arith.constant 0 : index
    %0 = vector.load %arg1[%c0, %c0_0] : memref<16x128xf32, #tpu.memory_space<vmem>>, vector<16x128xf32>
    %cst = arith.constant 3.000000e+00 : f32
    %1 = vector.broadcast %cst : f32 to vector<16x128xf32>
    %2 = arith.addf %0, %1 : vector<16x128xf32>
    %cst_1 = arith.constant 0.000000e+00 : f32
    %3 = vector.broadcast %cst_1 : f32 to vector<16x128xf32>
    %4 = arith.maximumf %2, %3 : vector<16x128xf32>
    %cst_2 = arith.constant 6.000000e+00 : f32
    %5 = vector.broadcast %cst_2 : f32 to vector<16x128xf32>
    %6 = arith.minimumf %4, %5 : vector<16x128xf32>
    %cst_3 = arith.constant 0.166666672 : f32
    %7 = vector.broadcast %cst_3 : f32 to vector<16x128xf32>
    %8 = arith.mulf %6, %7 : vector<16x128xf32>
    %c0_4 = arith.constant 0 : index
    %c0_5 = arith.constant 0 : index
    %9 = vector.load %arg2[%c0_4, %c0_5] : memref<16x128xf32, #tpu.memory_space<vmem>>, vector<16x128xf32>
    tpu.vector_store %arg2[%c0_4, %c0_5], %8 {strides = array<i32>} : memref<16x128xf32, #tpu.memory_space<vmem>>, vector<16x128xf32>,
    return
  }
  func.func @transform_0(%arg0: i32) -> (i32, i32) {
    %c0_i32 = arith.constant 0 : i32
    %c0_i32_0 = arith.constant 0 : i32
    return %arg0, %c0_i32 : i32, i32
  }
  func.func @transform_1(%arg0: i32) -> (i32, i32) {
    %c0_i32 = arith.constant 0 : i32
    %c0_i32_0 = arith.constant 0 : i32
    return %arg0, %c0_i32 : i32, i32
  }
}

</mosaic_0001>

<llo_original>
// kernel: fast_sigmoid.1
$region0: #{fast_sigmoid.1}
  #allocation0 [shape = 'u32[]', space=smem, size = 0x4, offset = 0x4, fixed_abs, tag = 'smem constant byte address 0x4 - core index']
  #allocation1 [shape = 'u32[144,128]{1,0:T(1,128)}', space=vmem, size = 0x12000, scoped, tag = 'internal scratch']
  %s0 = inlined_call_operand.vmem [shape: f32[16,128], index: 0, kind: input, shape index: {}]
  %s1 = inlined_call_operand.vmem [shape: f32[16,128], index: 1, kind: output, shape index: {}]
  %s2 = sld [smem:[#allocation0]]
  $region14: #{fast_sigmoid.1} parent=0
    _
  %s4 = ssub.s32 1, %s2
  %s5 = scalar_select 0, %s4, %s2
  // Predicated region
  $region2: #{fast_sigmoid.1} parent=0 // pred_check
    _
  $region3: #{fast_sigmoid.1} parent=0 // pred_check_branch
    %7 = sbr.rel (0) target = $region5
  $region4: #{fast_sigmoid.1} parent=0 // pred_region
    _
  $region5: #{fast_sigmoid.1} parent=0 // pred_fallthru
    _
  %v8 = vld [vmem:[%s0] sm:$0xff]
  %v9 = vld [vmem:[%s0 + $0x8] sm:$0xff]
  %v10 = vadd.f32 %v8, 3.0
  %v11 = vadd.f32 %v9, 3.0
  %v12 = vmax.f32 %v10, 0.0
  %v13 = vmax.f32 %v11, 0.0
  %v14 = vmin.f32 %v12, 6.0
  %v15 = vmin.f32 %v13, 6.0
  %v16 = vmul.f32 %v14, 0.16666667
  %v17 = vmul.f32 %v15, 0.16666667
  %18 = vst [vmem:[%s1] sm:$0xff] %v16
  %19 = vst [vmem:[%s1 + $0x8] sm:$0xff] %v17
  // Predicated region
  $region6: #{fast_sigmoid.1} parent=0 // pred_check
    _
  $region7: #{fast_sigmoid.1} parent=0 // pred_check_branch
    %21 = sbr.rel (0) target = $region9
  $region8: #{fast_sigmoid.1} parent=0 // pred_region
    _
  $region9: #{fast_sigmoid.1} parent=0 // pred_fallthru
    _
  // Predicated region
  $region10: #{fast_sigmoid.1} parent=0 // pred_check
    _
  $region11: #{fast_sigmoid.1} parent=0 // pred_check_branch
    %23 = sbr.rel (0) target = $region13
  $region12: #{fast_sigmoid.1} parent=0 // pred_region
    _
  $region13: #{fast_sigmoid.1} parent=0 // pred_fallthru
    _

</llo_original>
